<compile_context>
chip_gen: v7x
topology: tpu7x:2x2x1
jax: 0.10.0
libtpu: 0.0.40
codegen_flags: <defaults>
</compile_context>

<pallas_src>
import functools

import jax
import jax.numpy as jnp
from jax.experimental import pallas as pl
from jax.experimental.pallas import tpu as pltpu


def _stonet_kernel(num_layers, x_ref, *refs):
    """Fused MLP (+ReLU) + cause-specific-hazard kernel for one batch tile.

    refs = (w0, b0, w1, b1, ..., w_{L-1}, b_{L-1}, pair_ref, o_ref)
    Weights / biases / pair matrix are resident VMEM blocks (constant
    index_map); x_ref / o_ref are the current batch tile.
    """
    o_ref = refs[-1]
    pair_ref = refs[-2]
    params = refs[:-2]

    h = x_ref[...].astype(jnp.float32)
    for i in range(num_layers):
        if i > 0:  # ReLU before every layer except the first.
            h = jnp.maximum(h, 0.0)
        w = params[2 * i][...]
        b = params[2 * i + 1][...]          # (1, out) -> broadcasts over rows
        h = jnp.dot(h, w, preferred_element_type=jnp.float32) + b

    # cause_specific_hazard: view h as (b, v//2, 2);
    #   out = exp(h) / (1 + sum(exp(h), axis=-1, keepdims=True))
    # The per-pair sum is a matmul with a tiny resident block-diagonal pairing
    # matrix (precomputed host-side, kept in VMEM across the whole grid).
    e = jnp.exp(h)
    denom = 1.0 + jnp.dot(e, pair_ref[...], preferred_element_type=jnp.float32)
    # EUP approximate reciprocal + one Newton step (~f32 accurate).
    r0 = pl.reciprocal(denom, approx=True)
    r = r0 * (2.0 - denom * r0)
    o_ref[...] = (e * r).astype(o_ref.dtype)


def stonet_survival_forward(x, weights, biases, *, block_m=256):
    """x: (batch, input_dim) float32.  Returns (batch, output_dim // 2, 2)."""
    num_layers = len(weights)
    batch, in_dim = x.shape
    out_dim = weights[-1].shape[1]

    # Batch tile: whole batch for small inputs (block == full dim is always
    # legal), otherwise block_m rows (multiple of 8 sublanes) with zero
    # padding up to a tile multiple.
    if batch <= block_m:
        bm = batch
        padded = batch
    else:
        bm = block_m
        padded = -(-batch // bm) * bm
    x_p = x if padded == batch else jnp.pad(x, ((0, padded - batch), (0, 0)))

    # Block-diagonal pairing matrix: 1 where two output columns belong to the
    # same (event) pair.  Built once here; resident in VMEM inside the kernel.
    col = jnp.arange(out_dim)
    pair = (col[:, None] // 2 == col[None, :] // 2).astype(jnp.float32)

    args = [x_p]
    in_specs = [pl.BlockSpec((bm, in_dim), lambda i: (i, 0))]
    for w, b in zip(weights, biases):
        b2 = b.reshape(1, -1)
        args += [w, b2]
        in_specs += [
            pl.BlockSpec(w.shape, lambda i: (0, 0)),   # resident weight
            pl.BlockSpec(b2.shape, lambda i: (0, 0)),  # resident bias
        ]
    args.append(pair)
    in_specs.append(pl.BlockSpec(pair.shape, lambda i: (0, 0)))

    kernel = functools.partial(_stonet_kernel, num_layers)
    out2d = pl.pallas_call(
        kernel,
        grid=(padded // bm,),
        out_shape=jax.ShapeDtypeStruct((padded, out_dim), jnp.float32),
        in_specs=in_specs,
        out_specs=pl.BlockSpec((bm, out_dim), lambda i: (i, 0)),
        compiler_params=pltpu.CompilerParams(
            dimension_semantics=("parallel",),  # shard batch over TCs on v7x
        ),
    )(*args)

    if padded != batch:
        out2d = out2d[:batch]
    # Final reshape of the hazard output (glue, not compute; keeps the kernel
    # output store lane-dense).
    return out2d.reshape(batch, out_dim // 2, 2)


def _reference_forward(x, weights, biases):
    """Pure-JAX reference mirroring the PyTorch module."""
    h = x
    for i, (w, b) in enumerate(zip(weights, biases)):
        if i > 0:
            h = jnp.maximum(h, 0.0)
        h = h @ w + b
    bsz, _ = h.shape
    h3 = h.reshape(bsz, -1, 2)
    num = jnp.exp(h3)
    den = 1.0 + jnp.sum(jnp.exp(h3), axis=-1, keepdims=True)
    return num / den


if __name__ == "__main__":
    # Module configuration (small, consistent with StoNet_Survival.__init__)
    num_hidden = 2
    input_dim = 16
    hidden_dim = [32, 32]
    n_event = 2
    output_dim = 2 * n_event   # reshaped to (batch, n_event, 2) by the hazard head
    batch = 2

    key = jax.random.PRNGKey(0)
    k_x, key = jax.random.split(key)
    x = jax.random.normal(k_x, (batch, input_dim), dtype=jnp.float32)

    # Deterministic parameter init: layer i maps dims[i] -> dims[i+1]
    dims = [input_dim] + hidden_dim + [output_dim]
    weights, biases = [], []
    for i in range(num_hidden + 1):
        k_w, k_b, key = jax.random.split(key, 3)
        scale = 1.0 / jnp.sqrt(jnp.float32(dims[i]))
        weights.append(scale * jax.random.normal(k_w, (dims[i], dims[i + 1]),
                                                 dtype=jnp.float32))
        biases.append(scale * jax.random.normal(k_b, (dims[i + 1],),
                                                dtype=jnp.float32))

    # 1) Tiny-batch path (single grid step, block == full batch).
    out = jax.block_until_ready(stonet_survival_forward(x, weights, biases))
    ref = _reference_forward(x, weights, biases)
    assert out.shape == (batch, output_dim // 2, 2), out.shape
    assert jnp.allclose(out, ref, atol=1e-4, rtol=1e-4), "mismatch vs reference"

    # 2) Tiled + padded path (batch > block_m -> multi-step parallel grid).
    k_xb, key = jax.random.split(key)
    big_batch = 600
    xb = jax.random.normal(k_xb, (big_batch, input_dim), dtype=jnp.float32)
    out_b = jax.block_until_ready(
        stonet_survival_forward(xb, weights, biases, block_m=256))
    ref_b = _reference_forward(xb, weights, biases)
    assert out_b.shape == (big_batch, output_dim // 2, 2), out_b.shape
    assert jnp.allclose(out_b, ref_b, atol=1e-4, rtol=1e-4), "tiled mismatch"

    print("KERNEL_OK")
</pallas_src>

<mosaic_0001>
module attributes {stable_mosaic.version = 11 : i64} {
  func.func @_stonet_kernel(%arg0: i32, %arg1: memref<2x16xf32, #tpu.memory_space<vmem>>, %arg2: memref<16x32xf32, #tpu.memory_space<vmem>>, %arg3: memref<1x32xf32, #tpu.memory_space<vmem>>, %arg4: memref<32x32xf32, #tpu.memory_space<vmem>>, %arg5: memref<1x32xf32, #tpu.memory_space<vmem>>, %arg6: memref<32x4xf32, #tpu.memory_space<vmem>>, %arg7: memref<1x4xf32, #tpu.memory_space<vmem>>, %arg8: memref<4x4xf32, #tpu.memory_space<vmem>>, %arg9: memref<2x4xf32, #tpu.memory_space<vmem>>) attributes {dimension_semantics = [#tpu.dimension_semantics<parallel>], iteration_bounds = array<i64: 1>, scalar_prefetch = 0 : i64, scratch_operands = 0 : i64, tpu.core_type = #tpu.core_type<tc>, window_params = [{transform_indices = @transform_0, window_bounds = array<i64: 2, 16>}, {pipeline_mode = #tpu.pipeline_mode<synchronous>, transform_indices = @transform_1, window_bounds = array<i64: 16, 32>}, {pipeline_mode = #tpu.pipeline_mode<synchronous>, transform_indices = @transform_2, window_bounds = array<i64: 1, 32>}, {pipeline_mode = #tpu.pipeline_mode<synchronous>, transform_indices = @transform_3, window_bounds = array<i64: 32, 32>}, {pipeline_mode = #tpu.pipeline_mode<synchronous>, transform_indices = @transform_4, window_bounds = array<i64: 1, 32>}, {pipeline_mode = #tpu.pipeline_mode<synchronous>, transform_indices = @transform_5, window_bounds = array<i64: 32, 4>}, {pipeline_mode = #tpu.pipeline_mode<synchronous>, transform_indices = @transform_6, window_bounds = array<i64: 1, 4>}, {pipeline_mode = #tpu.pipeline_mode<synchronous>, transform_indices = @transform_7, window_bounds = array<i64: 4, 4>}, {transform_indices = @transform_8, window_bounds = array<i64: 2, 4>}]} {
    %c0 = arith.constant 0 : index
    %c0_0 = arith.constant 0 : index
    %0 = vector.load %arg1[%c0, %c0_0] : memref<2x16xf32, #tpu.memory_space<vmem>>, vector<2x16xf32>
    %c0_1 = arith.constant 0 : index
    %c0_2 = arith.constant 0 : index
    %1 = vector.load %arg2[%c0_1, %c0_2] : memref<16x32xf32, #tpu.memory_space<vmem>>, vector<16x32xf32>
    %c0_3 = arith.constant 0 : index
    %c0_4 = arith.constant 0 : index
    %2 = vector.load %arg3[%c0_3, %c0_4] : memref<1x32xf32, #tpu.memory_space<vmem>>, vector<1x32xf32>
    %cst = arith.constant dense<0.000000e+00> : vector<2x32xf32>
    %3 = tpu.matmul %0, %1, %cst {dimension_numbers = #tpu.dot_dimension_numbers<[1], [0], [0], [1], [0, 0, 1, 1], [], []>} : vector<2x16xf32>, vector<16x32xf32>, vector<2x32xf32> -> vector<2x32xf32>
    %4 = vector.broadcast %2 : vector<1x32xf32> to vector<2x32xf32>
    %5 = arith.addf %3, %4 : vector<2x32xf32>
    %cst_5 = arith.constant 0.000000e+00 : f32
    %6 = vector.broadcast %cst_5 : f32 to vector<2x32xf32>
    %7 = arith.maximumf %5, %6 : vector<2x32xf32>
    %c0_6 = arith.constant 0 : index
    %c0_7 = arith.constant 0 : index
    %8 = vector.load %arg4[%c0_6, %c0_7] : memref<32x32xf32, #tpu.memory_space<vmem>>, vector<32x32xf32>
    %c0_8 = arith.constant 0 : index
    %c0_9 = arith.constant 0 : index
    %9 = vector.load %arg5[%c0_8, %c0_9] : memref<1x32xf32, #tpu.memory_space<vmem>>, vector<1x32xf32>
    %cst_10 = arith.constant dense<0.000000e+00> : vector<2x32xf32>
    %10 = tpu.matmul %7, %8, %cst_10 {dimension_numbers = #tpu.dot_dimension_numbers<[1], [0], [0], [1], [0, 0, 1, 1], [], []>} : vector<2x32xf32>, vector<32x32xf32>, vector<2x32xf32> -> vector<2x32xf32>
    %11 = vector.broadcast %9 : vector<1x32xf32> to vector<2x32xf32>
    %12 = arith.addf %10, %11 : vector<2x32xf32>
    %cst_11 = arith.constant 0.000000e+00 : f32
    %13 = vector.broadcast %cst_11 : f32 to vector<2x32xf32>
    %14 = arith.maximumf %12, %13 : vector<2x32xf32>
    %c0_12 = arith.constant 0 : index
    %c0_13 = arith.constant 0 : index
    %15 = vector.load %arg6[%c0_12, %c0_13] : memref<32x4xf32, #tpu.memory_space<vmem>>, vector<32x4xf32>
    %c0_14 = arith.constant 0 : index
    %c0_15 = arith.constant 0 : index
    %16 = vector.load %arg7[%c0_14, %c0_15] : memref<1x4xf32, #tpu.memory_space<vmem>>, vector<1x4xf32>
    %cst_16 = arith.constant dense<0.000000e+00> : vector<2x4xf32>
    %17 = tpu.matmul %14, %15, %cst_16 {dimension_numbers = #tpu.dot_dimension_numbers<[1], [0], [0], [1], [0, 0, 1, 1], [], []>} : vector<2x32xf32>, vector<32x4xf32>, vector<2x4xf32> -> vector<2x4xf32>
    %18 = vector.broadcast %16 : vector<1x4xf32> to vector<2x4xf32>
    %19 = arith.addf %17, %18 : vector<2x4xf32>
    %20 = math.exp %19 : vector<2x4xf32>
    %c0_17 = arith.constant 0 : index
    %c0_18 = arith.constant 0 : index
    %21 = vector.load %arg8[%c0_17, %c0_18] : memref<4x4xf32, #tpu.memory_space<vmem>>, vector<4x4xf32>
    %cst_19 = arith.constant dense<0.000000e+00> : vector<2x4xf32>
    %22 = tpu.matmul %20, %21, %cst_19 {dimension_numbers = #tpu.dot_dimension_numbers<[1], [0], [0], [1], [0, 0, 1, 1], [], []>} : vector<2x4xf32>, vector<4x4xf32>, vector<2x4xf32> -> vector<2x4xf32>
    %cst_20 = arith.constant 1.000000e+00 : f32
    %23 = vector.broadcast %cst_20 : f32 to vector<2x4xf32>
    %24 = arith.addf %23, %22 : vector<2x4xf32>
    %25 = tpu.reciprocal %24 {approx = true} : vector<2x4xf32> -> vector<2x4xf32>
    %26 = arith.mulf %24, %25 : vector<2x4xf32>
    %cst_21 = arith.constant 2.000000e+00 : f32
    %27 = vector.broadcast %cst_21 : f32 to vector<2x4xf32>
    %28 = arith.subf %27, %26 : vector<2x4xf32>
    %29 = arith.mulf %25, %28 : vector<2x4xf32>
    %30 = arith.mulf %20, %29 : vector<2x4xf32>
    %c0_22 = arith.constant 0 : index
    %c0_23 = arith.constant 0 : index
    %31 = vector.load %arg9[%c0_22, %c0_23] : memref<2x4xf32, #tpu.memory_space<vmem>>, vector<2x4xf32>
    tpu.vector_store %arg9[%c0_22, %c0_23], %30 {strides = array<i32>} : memref<2x4xf32, #tpu.memory_space<vmem>>, vector<2x4xf32>,
    return
  }
  func.func @transform_0(%arg0: i32) -> (i32, i32) {
    %c0_i32 = arith.constant 0 : i32
    %c0_i32_0 = arith.constant 0 : i32
    return %arg0, %c0_i32 : i32, i32
  }
  func.func @transform_1(%arg0: i32) -> (i32, i32) {
    %c0_i32 = arith.constant 0 : i32
    %c0_i32_0 = arith.constant 0 : i32
    %c0_i32_1 = arith.constant 0 : i32
    return %c0_i32, %c0_i32_0 : i32, i32
  }
  func.func @transform_2(%arg0: i32) -> (i32, i32) {
    %c0_i32 = arith.constant 0 : i32
    %c0_i32_0 = arith.constant 0 : i32
    %c0_i32_1 = arith.constant 0 : i32
    return %c0_i32, %c0_i32_0 : i32, i32
  }
  func.func @transform_3(%arg0: i32) -> (i32, i32) {
    %c0_i32 = arith.constant 0 : i32
    %c0_i32_0 = arith.constant 0 : i32
    %c0_i32_1 = arith.constant 0 : i32
    return %c0_i32, %c0_i32_0 : i32, i32
  }
  func.func @transform_4(%arg0: i32) -> (i32, i32) {
    %c0_i32 = arith.constant 0 : i32
    %c0_i32_0 = arith.constant 0 : i32
    %c0_i32_1 = arith.constant 0 : i32
    return %c0_i32, %c0_i32_0 : i32, i32
  }
  func.func @transform_5(%arg0: i32) -> (i32, i32) {
    %c0_i32 = arith.constant 0 : i32
    %c0_i32_0 = arith.constant 0 : i32
    %c0_i32_1 = arith.constant 0 : i32
    return %c0_i32, %c0_i32_0 : i32, i32
  }
  func.func @transform_6(%arg0: i32) -> (i32, i32) {
    %c0_i32 = arith.constant 0 : i32
    %c0_i32_0 = arith.constant 0 : i32
    %c0_i32_1 = arith.constant 0 : i32
    return %c0_i32, %c0_i32_0 : i32, i32
  }
  func.func @transform_7(%arg0: i32) -> (i32, i32) {
    %c0_i32 = arith.constant 0 : i32
    %c0_i32_0 = arith.constant 0 : i32
    %c0_i32_1 = arith.constant 0 : i32
    return %c0_i32, %c0_i32_0 : i32, i32
  }
  func.func @transform_8(%arg0: i32) -> (i32, i32) {
    %c0_i32 = arith.constant 0 : i32
    %c0_i32_0 = arith.constant 0 : i32
    return %arg0, %c0_i32 : i32, i32
  }
}

</mosaic_0001>

<llo_original>
// kernel: tpu_custom_call.1
$region0: #{tpu_custom_call.1}
  #allocation0 [shape = 'u32[]', space=smem, size = 0x4, offset = 0x4, fixed_abs, tag = 'smem constant byte address 0x4 - core index']
  #allocation1 [shape = 'u32[144,128]{1,0:T(1,128)}', space=vmem, size = 0x12000, scoped, tag = 'internal scratch']
  %s0 = inlined_call_operand.vmem [shape: f32[2,16], index: 0, kind: input, shape index: {}]
  %s1 = inlined_call_operand.hbm [shape: f32[16,32], index: 1, kind: input, shape index: {}]
  %s2 = inlined_call_operand.vmem [shape: f32[1,32], index: 2, kind: input, shape index: {}]
  %s3 = inlined_call_operand.vmem [shape: f32[32,32], index: 3, kind: input, shape index: {}]
  %s4 = inlined_call_operand.vmem [shape: f32[1,32], index: 4, kind: input, shape index: {}]
  %s5 = inlined_call_operand.vmem [shape: f32[32,4], index: 5, kind: input, shape index: {}]
  %s6 = inlined_call_operand.vmem [shape: f32[1,4], index: 6, kind: input, shape index: {}]
  %s7 = inlined_call_operand.vmem [shape: f32[4,4], index: 7, kind: input, shape index: {}]
  %s8 = inlined_call_operand.hbm [shape: f32[2,4], index: 8, kind: output, shape index: {}]
  %s9 = sld [smem:[#allocation0]]
  $region46: #{tpu_custom_call.1} parent=0
    _
  %s11 = ssub.s32 1, %s9
  %s12 = scalar_select 0, %s11, %s9
  $region1: #{tpu_custom_call.1} parent=0
    #allocation2 [shape = 'u8[8192]{0}', space=vmem, size = 0x2000, scoped, tag = 'input window, operand 1, single buffered']
    #allocation3 [shape = 's32[1]{0}', space=sflag, size = 0x4, scoped, tag = 'scoped memory for tpu_custom_call.1']
    #allocation4 [shape = 's32[1]{0}', space=sflag, size = 0x4, scoped, tag = 'scoped memory for tpu_custom_call.1']
    #allocation5 [shape = 'u8[1024]{0}', space=vmem, size = 0x400, scoped, tag = 'output window, operand 0, single buffered']
    %13 = vsyncpa [#allocation3], 0
    %14 = vsyncpa [#allocation4], 0
    // Predicated region
    $region2: #{tpu_custom_call.1} parent=1 // pred_check
      _
    $region3: #{tpu_custom_call.1} parent=1 // pred_check_branch
      %16 = sbr.rel (0) target = $region5
    $region4: #{tpu_custom_call.1} parent=1 // pred_region
      _
    $region5: #{tpu_custom_call.1} parent=1 // pred_fallthru
      _
    // Predicated region
    $region6: #{tpu_custom_call.1} parent=1 // pred_check
      _
    $region7: #{tpu_custom_call.1} parent=1 // pred_check_branch
      %18 = sbr.rel (0) target = $region9
    $region8: #{tpu_custom_call.1} parent=1 // pred_region
      %s20 = ssub.s32 256, 256
      %21 = vsyncadd [#allocation3], %s20
      %s22 = sshll.u32 [#allocation2], 4
      %s23 = int_to_ptr.vmem [resolvable:$true] %s22
      %28 = dma.hbm_to_vmem [thread:$0]  %s1, 256, %s23, [#allocation3], 128, 128, 8
    $region9: #{tpu_custom_call.1} parent=1 // pred_fallthru
      _
    // Predicated region
    $region10: #{tpu_custom_call.1} parent=1 // pred_check
      _
    $region11: #{tpu_custom_call.1} parent=1 // pred_check_branch
      %30 = sbr.rel (0) target = $region13
    $region12: #{tpu_custom_call.1} parent=1 // pred_region
      _
    $region13: #{tpu_custom_call.1} parent=1 // pred_fallthru
      _
    // Predicated region
    $region14: #{tpu_custom_call.1} parent=1 // pred_check
      _
    $region15: #{tpu_custom_call.1} parent=1 // pred_check_branch
      %32 = sbr.rel (0) target = $region17
    $region16: #{tpu_custom_call.1} parent=1 // pred_region
      _
    $region17: #{tpu_custom_call.1} parent=1 // pred_fallthru
      _
    // Predicated region
    $region18: #{tpu_custom_call.1} parent=1 // pred_check
      _
    $region19: #{tpu_custom_call.1} parent=1 // pred_check_branch
      %34 = sbr.rel (0) target = $region21
    $region20: #{tpu_custom_call.1} parent=1 // pred_region
      _
    $region21: #{tpu_custom_call.1} parent=1 // pred_fallthru
      _
    // Predicated region
    $region22: #{tpu_custom_call.1} parent=1 // pred_check
      _
    $region23: #{tpu_custom_call.1} parent=1 // pred_check_branch
      %36 = sbr.rel (0) target = $region25
    $region24: #{tpu_custom_call.1} parent=1 // pred_region
      _
    $region25: #{tpu_custom_call.1} parent=1 // pred_fallthru
      _
    // Predicated region
    $region26: #{tpu_custom_call.1} parent=1 // pred_check
      _
    $region27: #{tpu_custom_call.1} parent=1 // pred_check_branch
      %38 = sbr.rel (0) target = $region29
    $region28: #{tpu_custom_call.1} parent=1 // pred_region
      _
    $region29: #{tpu_custom_call.1} parent=1 // pred_fallthru
      _
    // Predicated region
    $region30: #{tpu_custom_call.1} parent=1 // pred_check
      _
    $region31: #{tpu_custom_call.1} parent=1 // pred_check_branch
      %40 = sbr.rel (0) target = $region33
    $region32: #{tpu_custom_call.1} parent=1 // pred_region
      _
    $region33: #{tpu_custom_call.1} parent=1 // pred_fallthru
      _
    // Predicated region
    $region34: #{tpu_custom_call.1} parent=1 // pred_check
      _
    $region35: #{tpu_custom_call.1} parent=1 // pred_check_branch
      %42 = sbr.rel (0) target = $region37
    $region36: #{tpu_custom_call.1} parent=1 // pred_region
      %43 = dma.done [#allocation3], 256
    $region37: #{tpu_custom_call.1} parent=1 // pred_fallthru
      _
    %v44 = vld [vmem:[%s0] sm:$0x3]
    %v45 = vld [vmem:[#allocation2] sm:$0xff]
    %v46 = vld [vmem:[#allocation2 + $0x8] sm:$0xff]
    %v47 = vld [vmem:[%s2] sm:$0x1]
    %v49 = vlaneseq
    %v50 = vshrl.u32 %v49, 7
    %v51 = vsub.s32 0, %v50
    %v52 = vrot.slane %v47, %v51
    %vm54 = vcmask 130048
    %v56 = vsel %vm54, %v44, 0
    %58 = vmatprep.subr.mxu0 0.0
    %59 = vmatpush1.msra.mxu0 %v45
    %60 = vmatprep.subr.mxu0 0.0
    %61 = vmatpush1.msra.mxu0 %v46
    %62 = vmatprep.subr.mxu0 0.0
    %63 = vmatpush1.msra.mxu0 0.0
    %64 = vmatprep.subr.mxu0 0.0
    %65 = vmatpush1.msra.mxu0 0.0
    %66 = vmatprep.subr.mxu0 0.0
    %67 = vmatpush1.msra.mxu0 0.0
    %68 = vmatprep.subr.mxu0 0.0
    %69 = vmatpush1.msra.mxu0 0.0
    %70 = vmatprep.subr.mxu0 0.0
    %71 = vmatpush1.msra.mxu0 0.0
    %72 = vmatprep.subr.mxu0 0.0
    %73 = vmatpush1.msra.mxu0 0.0
    %74 = vmatprep.subr.mxu0 0.0
    %75 = vmatpush1.msra.mxu0 0.0
    %76 = vmatprep.subr.mxu0 0.0
    %77 = vmatpush1.msra.mxu0 0.0
    %78 = vmatprep.subr.mxu0 0.0
    %79 = vmatpush1.msra.mxu0 0.0
    %80 = vmatprep.subr.mxu0 0.0
    %81 = vmatpush1.msra.mxu0 0.0
    %82 = vmatprep.subr.mxu0 0.0
    %83 = vmatpush1.msra.mxu0 0.0
    %84 = vmatprep.subr.mxu0 0.0
    %85 = vmatpush1.msra.mxu0 0.0
    %86 = vmatprep.subr.mxu0 0.0
    %87 = vmatpush1.msra.mxu0 0.0
    %88 = vmatprep.subr.mxu0 0.0
    %89 = vmatpush1.msra.mxu0 0.0
    %90 = vmatprep.subr.mxu0 0.0
    %91 = vmatpush1.msra.mxu0 0.0
    %92 = vmatprep.subr.mxu0 0.0
    %93 = vmatpush1.msra.mxu0 0.0
    %94 = vmatprep.subr.mxu0 0.0
    %95 = vmatpush1.msra.mxu0 0.0
    %96 = vmatprep.subr.mxu0 0.0
    %97 = vmatpush1.msra.mxu0 0.0
    %98 = vmatprep.subr.mxu0 0.0
    %99 = vmatpush1.msra.mxu0 0.0
    %100 = vmatprep.subr.mxu0 0.0
    %101 = vmatpush1.msra.mxu0 0.0
    %102 = vmatprep.subr.mxu0 0.0
    %103 = vmatpush1.msra.mxu0 0.0
    %104 = vmatprep.subr.mxu0 0.0
    %105 = vmatpush1.msra.mxu0 0.0
    %106 = vmatprep.subr.mxu0 0.0
    %107 = vmatpush1.msra.mxu0 0.0
    %108 = vmatprep.subr.mxu0 0.0
    %109 = vmatpush1.msra.mxu0 0.0
    %110 = vmatprep.subr.mxu0 0.0
    %111 = vmatpush1.msra.mxu0 0.0
    %112 = vmatprep.subr.mxu0 0.0
    %113 = vmatpush1.msra.mxu0 0.0
    %114 = vmatprep.subr.mxu0 0.0
    %115 = vmatpush1.msra.mxu0 0.0
    %116 = vmatprep.subr.mxu0 0.0
    %117 = vmatpush1.msra.mxu0 0.0
    %118 = vmatprep.subr.mxu0 0.0
    %119 = vmatpush1.msra.mxu0 0.0
    %120 = vmatprep.subr.mxu0 0.0
    %121 = vmatpush1.msra.mxu0 0.0
    %122 = vmatprep.mubr.f32.mxu0 0.0
    %123 = vmatmul.mubr.f32.gmra.mrb[0].mxu0 %v56
    %v124 = vpop.f32.mrb[0].mxu0
    %v125 = vadd.f32 %v52, %v124
    %v126 = vpop.f32.mrb[0].mxu0
    %127 = vdwg.mxu0
    %v128 = vmax.f32 %v125, 0.0
    %v129 = vld [vmem:[%s3] sm:$0xff]
    %v130 = vld [vmem:[%s3 + $0x8] sm:$0xff]
    %v131 = vld [vmem:[%s3 + $0x10] sm:$0xff]
    %v132 = vld [vmem:[%s3 + $0x18] sm:$0xff]
    %v133 = vld [vmem:[%s4] sm:$0x1]
    %v135 = vlaneseq
    %v136 = vshrl.u32 %v135, 7
    %v137 = vsub.s32 0, %v136
    %v138 = vrot.slane %v133, %v137
    %vm140 = vcmask 261120
    %v142 = vsel %vm140, %v128, 0
    %144 = vmatprep.subr.mxu0 0.0
    %145 = vmatpush1.msra.mxu0 %v129
    %146 = vmatprep.subr.mxu0 0.0
    %147 = vmatpush1.msra.mxu0 %v130
    %148 = vmatprep.subr.mxu0 0.0
    %149 = vmatpush1.msra.mxu0 %v131
    %150 = vmatprep.subr.mxu0 0.0
    %151 = vmatpush1.msra.mxu0 %v132
    %152 = vmatprep.subr.mxu0 0.0
    %153 = vmatpush1.msra.mxu0 0.0
    %154 = vmatprep.subr.mxu0 0.0
    %155 = vmatpush1.msra.mxu0 0.0
    %156 = vmatprep.subr.mxu0 0.0
    %157 = vmatpush1.msra.mxu0 0.0
    %158 = vmatprep.subr.mxu0 0.0
    %159 = vmatpush1.msra.mxu0 0.0
    %160 = vmatprep.subr.mxu0 0.0
    %161 = vmatpush1.msra.mxu0 0.0
    %162 = vmatprep.subr.mxu0 0.0
    %163 = vmatpush1.msra.mxu0 0.0
    %164 = vmatprep.subr.mxu0 0.0
    %165 = vmatpush1.msra.mxu0 0.0
    %166 = vmatprep.subr.mxu0 0.0
    %167 = vmatpush1.msra.mxu0 0.0
    %168 = vmatprep.subr.mxu0 0.0
    %169 = vmatpush1.msra.mxu0 0.0
    %170 = vmatprep.subr.mxu0 0.0
    %171 = vmatpush1.msra.mxu0 0.0
    %172 = vmatprep.subr.mxu0 0.0
    %173 = vmatpush1.msra.mxu0 0.0
    %174 = vmatprep.subr.mxu0 0.0
    %175 = vmatpush1.msra.mxu0 0.0
    %176 = vmatprep.subr.mxu0 0.0
    %177 = vmatpush1.msra.mxu0 0.0
    %178 = vmatprep.subr.mxu0 0.0
    %179 = vmatpush1.msra.mxu0 0.0
    %180 = vmatprep.subr.mxu0 0.0
    %181 = vmatpush1.msra.mxu0 0.0
    %182 = vmatprep.subr.mxu0 0.0
    %183 = vmatpush1.msra.mxu0 0.0
    %184 = vmatprep.subr.mxu0 0.0
    %185 = vmatpush1.msra.mxu0 0.0
    %186 = vmatprep.subr.mxu0 0.0
    %187 = vmatpush1.msra.mxu0 0.0
    %188 = vmatprep.subr.mxu0 0.0
    %189 = vmatpush1.msra.mxu0 0.0
    %190 = vmatprep.subr.mxu0 0.0
    %191 = vmatpush1.msra.mxu0 0.0
    %192 = vmatprep.subr.mxu0 0.0
    %193 = vmatpush1.msra.mxu0 0.0
    %194 = vmatprep.subr.mxu0 0.0
    %195 = vmatpush1.msra.mxu0 0.0
    %196 = vmatprep.subr.mxu0 0.0
    %197 = vmatpush1.msra.mxu0 0.0
    %198 = vmatprep.subr.mxu0 0.0
    %199 = vmatpush1.msra.mxu0 0.0
    %200 = vmatprep.subr.mxu0 0.0
    %201 = vmatpush1.msra.mxu0 0.0
    %202 = vmatprep.subr.mxu0 0.0
    %203 = vmatpush1.msra.mxu0 0.0
    %204 = vmatprep.subr.mxu0 0.0
    %205 = vmatpush1.msra.mxu0 0.0
    %206 = vmatprep.subr.mxu0 0.0
    %207 = vmatpush1.msra.mxu0 0.0
    %208 = vmatprep.mubr.f32.mxu0 0.0
    %209 = vmatmul.mubr.f32.gmra.mrb[0].mxu0 %v142
    %v210 = vpop.f32.mrb[0].mxu0
    %v211 = vadd.f32 %v138, %v210
    %v212 = vpop.f32.mrb[0].mxu0
    %213 = vdwg.mxu0
    %v214 = vmax.f32 %v211, 0.0
    %v215 = vld [vmem:[%s5] sm:$0xff]
    %v216 = vld [vmem:[%s5 + $0x8] sm:$0xff]
    %v217 = vld [vmem:[%s5 + $0x10] sm:$0xff]
    %v218 = vld [vmem:[%s5 + $0x18] sm:$0xff]
    %v219 = vld [vmem:[%s6] sm:$0x1]
    %v221 = vlaneseq
    %v222 = vshrl.u32 %v221, 7
    %v223 = vsub.s32 0, %v222
    %v224 = vrot.slane %v219, %v223
    %v227 = vsel %vm140, %v214, 0
    %229 = vmatprep.subr.mxu0 0.0
    %230 = vmatpush1.msra.mxu0 %v215
    %231 = vmatprep.subr.mxu0 0.0
    %232 = vmatpush1.msra.mxu0 %v216
    %233 = vmatprep.subr.mxu0 0.0
    %234 = vmatpush1.msra.mxu0 %v217
    %235 = vmatprep.subr.mxu0 0.0
    %236 = vmatpush1.msra.mxu0 %v218
    %237 = vmatprep.subr.mxu0 0.0
    %238 = vmatpush1.msra.mxu0 0.0
    %239 = vmatprep.subr.mxu0 0.0
    %240 = vmatpush1.msra.mxu0 0.0
    %241 = vmatprep.subr.mxu0 0.0
    %242 = vmatpush1.msra.mxu0 0.0
    %243 = vmatprep.subr.mxu0 0.0
    %244 = vmatpush1.msra.mxu0 0.0
    %245 = vmatprep.subr.mxu0 0.0
    %246 = vmatpush1.msra.mxu0 0.0
    %247 = vmatprep.subr.mxu0 0.0
    %248 = vmatpush1.msra.mxu0 0.0
    %249 = vmatprep.subr.mxu0 0.0
    %250 = vmatpush1.msra.mxu0 0.0
    %251 = vmatprep.subr.mxu0 0.0
    %252 = vmatpush1.msra.mxu0 0.0
    %253 = vmatprep.subr.mxu0 0.0
    %254 = vmatpush1.msra.mxu0 0.0
    %255 = vmatprep.subr.mxu0 0.0
    %256 = vmatpush1.msra.mxu0 0.0
    %257 = vmatprep.subr.mxu0 0.0
    %258 = vmatpush1.msra.mxu0 0.0
    %259 = vmatprep.subr.mxu0 0.0
    %260 = vmatpush1.msra.mxu0 0.0
    %261 = vmatprep.subr.mxu0 0.0
    %262 = vmatpush1.msra.mxu0 0.0
    %263 = vmatprep.subr.mxu0 0.0
    %264 = vmatpush1.msra.mxu0 0.0
    %265 = vmatprep.subr.mxu0 0.0
    %266 = vmatpush1.msra.mxu0 0.0
    %267 = vmatprep.subr.mxu0 0.0
    %268 = vmatpush1.msra.mxu0 0.0
    %269 = vmatprep.subr.mxu0 0.0
    %270 = vmatpush1.msra.mxu0 0.0
    %271 = vmatprep.subr.mxu0 0.0
    %272 = vmatpush1.msra.mxu0 0.0
    %273 = vmatprep.subr.mxu0 0.0
    %274 = vmatpush1.msra.mxu0 0.0
    %275 = vmatprep.subr.mxu0 0.0
    %276 = vmatpush1.msra.mxu0 0.0
    %277 = vmatprep.subr.mxu0 0.0
    %278 = vmatpush1.msra.mxu0 0.0
    %279 = vmatprep.subr.mxu0 0.0
    %280 = vmatpush1.msra.mxu0 0.0
    %281 = vmatprep.subr.mxu0 0.0
    %282 = vmatpush1.msra.mxu0 0.0
    %283 = vmatprep.subr.mxu0 0.0
    %284 = vmatpush1.msra.mxu0 0.0
    %285 = vmatprep.subr.mxu0 0.0
    %286 = vmatpush1.msra.mxu0 0.0
    %287 = vmatprep.subr.mxu0 0.0
    %288 = vmatpush1.msra.mxu0 0.0
    %289 = vmatprep.subr.mxu0 0.0
    %290 = vmatpush1.msra.mxu0 0.0
    %291 = vmatprep.subr.mxu0 0.0
    %292 = vmatpush1.msra.mxu0 0.0
    %293 = vmatprep.mubr.f32.mxu0 0.0
    %294 = vmatmul.mubr.f32.gmra.mrb[0].mxu0 %v227
    %v295 = vpop.f32.mrb[0].mxu0
    %v296 = vadd.f32 %v224, %v295
    %v297 = vpop.f32.mrb[0].mxu0
    %298 = vdwg.mxu0
    %v299 = vmul.f32 %v296, 1.442695
    %v300 = vpow.pop %v299
    %v301 = vld [vmem:[%s7] sm:$0xf]
    %vm302 = vcmask 31744
    %v304 = vsel %vm302, %v300, 0
    %vm306 = vcmask 1043456
    %v308 = vsel %vm306, %v301, 0
    %310 = vmatprep.subr.mxu0 0.0
    %311 = vmatpush1.msra.mxu0 %v308
    %312 = vmatprep.subr.mxu0 0.0
    %313 = vmatpush1.msra.mxu0 0.0
    %314 = vmatprep.subr.mxu0 0.0
    %315 = vmatpush1.msra.mxu0 0.0
    %316 = vmatprep.subr.mxu0 0.0
    %317 = vmatpush1.msra.mxu0 0.0
    %318 = vmatprep.subr.mxu0 0.0
    %319 = vmatpush1.msra.mxu0 0.0
    %320 = vmatprep.subr.mxu0 0.0
    %321 = vmatpush1.msra.mxu0 0.0
    %322 = vmatprep.subr.mxu0 0.0
    %323 = vmatpush1.msra.mxu0 0.0
    %324 = vmatprep.subr.mxu0 0.0
    %325 = vmatpush1.msra.mxu0 0.0
    %326 = vmatprep.subr.mxu0 0.0
    %327 = vmatpush1.msra.mxu0 0.0
    %328 = vmatprep.subr.mxu0 0.0
    %329 = vmatpush1.msra.mxu0 0.0
    %330 = vmatprep.subr.mxu0 0.0
    %331 = vmatpush1.msra.mxu0 0.0
    %332 = vmatprep.subr.mxu0 0.0
    %333 = vmatpush1.msra.mxu0 0.0
    %334 = vmatprep.subr.mxu0 0.0
    %335 = vmatpush1.msra.mxu0 0.0
    %336 = vmatprep.subr.mxu0 0.0
    %337 = vmatpush1.msra.mxu0 0.0
    %338 = vmatprep.subr.mxu0 0.0
    %339 = vmatpush1.msra.mxu0 0.0
    %340 = vmatprep.subr.mxu0 0.0
    %341 = vmatpush1.msra.mxu0 0.0
    %342 = vmatprep.subr.mxu0 0.0
    %343 = vmatpush1.msra.mxu0 0.0
    %344 = vmatprep.subr.mxu0 0.0
    %345 = vmatpush1.msra.mxu0 0.0
    %346 = vmatprep.subr.mxu0 0.0
    %347 = vmatpush1.msra.mxu0 0.0
    %348 = vmatprep.subr.mxu0 0.0
    %349 = vmatpush1.msra.mxu0 0.0
    %350 = vmatprep.subr.mxu0 0.0
    %351 = vmatpush1.msra.mxu0 0.0
    %352 = vmatprep.subr.mxu0 0.0
    %353 = vmatpush1.msra.mxu0 0.0
    %354 = vmatprep.subr.mxu0 0.0
    %355 = vmatpush1.msra.mxu0 0.0
    %356 = vmatprep.subr.mxu0 0.0
    %357 = vmatpush1.msra.mxu0 0.0
    %358 = vmatprep.subr.mxu0 0.0
    %359 = vmatpush1.msra.mxu0 0.0
    %360 = vmatprep.subr.mxu0 0.0
    %361 = vmatpush1.msra.mxu0 0.0
    %362 = vmatprep.subr.mxu0 0.0
    %363 = vmatpush1.msra.mxu0 0.0
    %364 = vmatprep.subr.mxu0 0.0
    %365 = vmatpush1.msra.mxu0 0.0
    %366 = vmatprep.subr.mxu0 0.0
    %367 = vmatpush1.msra.mxu0 0.0
    %368 = vmatprep.subr.mxu0 0.0
    %369 = vmatpush1.msra.mxu0 0.0
    %370 = vmatprep.subr.mxu0 0.0
    %371 = vmatpush1.msra.mxu0 0.0
    %372 = vmatprep.subr.mxu0 0.0
    %373 = vmatpush1.msra.mxu0 0.0
    %374 = vmatprep.mubr.f32.mxu0 0.0
    %375 = vmatmul.mubr.f32.gmra.mrb[0].mxu0 %v304
    %v376 = vpop.f32.mrb[0].mxu0
    %v377 = vadd.f32 1.0, %v376
    %v378 = vpop.f32.mrb[0].mxu0
    %379 = vdwg.mxu0
    %v380 = vrcp.pop %v377
    %v381 = vmul.f32 %v377, %v380
    %v382 = vsub.f32 2.0, %v381
    %v383 = vmul.f32 %v380, %v382
    %v384 = vmul.f32 %v300, %v383
    %vm385 = vcmask 25600
    %386 = vst.msk [vmem:[#allocation5] sm:$0x3] %vm385, %v384
    // Predicated region
    $region38: #{tpu_custom_call.1} parent=1 // pred_check
      _
    $region39: #{tpu_custom_call.1} parent=1 // pred_check_branch
      %388 = sbr.rel (0) target = $region41
    $region40: #{tpu_custom_call.1} parent=1 // pred_region
      %s390 = ssub.s32 32, 32
      %391 = vsyncadd [#allocation4], %s390
      %s393 = sshll.u32 [#allocation5], 4
      %s394 = int_to_ptr.vmem [resolvable:$true] %s393
      %396 = dma.vmem_to_hbm [thread:$0]  %s394, 32, %s8, [#allocation4]
    $region41: #{tpu_custom_call.1} parent=1 // pred_fallthru
      _
    // Predicated region
    $region42: #{tpu_custom_call.1} parent=1 // pred_check
      _
    $region43: #{tpu_custom_call.1} parent=1 // pred_check_branch
      %398 = sbr.rel (0) target = $region45
    $region44: #{tpu_custom_call.1} parent=1 // pred_region
      %399 = dma.done [#allocation4], 32
    $region45: #{tpu_custom_call.1} parent=1 // pred_fallthru
      _
    %400 = vsyncpa [#allocation3], 1
    %401 = vsyncpa [#allocation4], 1

</llo_original>
